<compile_context>
chip_gen: v5e
topology: v5e:2x2
jax: 0.10.0
libtpu: 0.0.40
codegen_flags: <defaults>
</compile_context>

<pallas_src>
import jax
import jax.numpy as jnp
from jax.experimental import pallas as pl
from jax.experimental.pallas import tpu as pltpu

MIN_VALUE = -9.18180582429698e37
MAX_VALUE = 9.152457547119235e37


def linear_clamp_kernel(x_ref, a_ref, b_ref, o_ref):
    # x_ref: (tb, 96)  VMEM -- 32 interleaved input rows per sublane row
    # a_ref: (96, 128) VMEM -- block-diagonal weights: 32 copies of W^T (3x4)
    # b_ref: (1, 128)  VMEM -- bias tiled 32x
    # o_ref: (tb, 128) VMEM -- 32 interleaved output rows per sublane row
    y = jnp.dot(x_ref[...], a_ref[...], preferred_element_type=jnp.float32)
    y = y + b_ref[...]
    y = jnp.maximum(y, jnp.float32(MIN_VALUE))   # clamp_min
    y = jnp.minimum(y, jnp.float32(MAX_VALUE))   # clamp_max
    o_ref[...] = y.astype(o_ref.dtype)


def linear_clamp(x, weight, bias, *, tb=2048):
    """x: (..., K=3); weight: (N=4, K) [PyTorch Linear layout]; bias: (N,)."""
    K = x.shape[-1]
    N = weight.shape[0]
    G = 32                                  # rows per sublane row (G*N == 128)
    lead = x.shape[:-1]

    x2 = x.reshape(-1, K).astype(jnp.float32)
    M = x2.shape[0]

    # Group rows: the (R, G*K) view is a free, contiguous reshape when
    # M % G == 0 (the common case -> zero extra HBM passes).
    M_pad = pl.cdiv(M, G) * G
    if M_pad != M:
        # TODO(synk): handle the <32-row tail with an in-kernel masked store
        # instead of this (rare) full-array pad.
        x2 = jnp.pad(x2, ((0, M_pad - M), (0, 0)))
    R = M_pad // G
    x_rows = x2.reshape(R, G * K)                              # (R, 96)

    # Constant block-diagonal weight matrix:
    #   A[g*K + k, h*N + n] = W^T[k, n] if g == h else 0
    wt = weight.astype(jnp.float32).T                          # (K, N)
    A = (jnp.eye(G, dtype=jnp.float32)[:, None, :, None]
         * wt[None, :, None, :]).reshape(G * K, G * N)         # (96, 128)
    b_row = jnp.tile(bias.astype(jnp.float32), G).reshape(1, G * N)  # (1, 128)

    # Block size (sublane rows): multiple of 8, never (much) bigger than the
    # row count, and split into >= 2 grid steps when there is enough work so
    # the parallel axis can use both v7x TensorCores.
    tb_eff = min(tb, pl.cdiv(R, 8) * 8)
    if R >= 16:
        tb_eff = min(tb_eff, pl.cdiv(pl.cdiv(R, 2), 8) * 8)
    grid = (pl.cdiv(R, tb_eff),)                # partial last block is masked

    out = pl.pallas_call(
        linear_clamp_kernel,
        out_shape=jax.ShapeDtypeStruct((R, G * N), jnp.float32),
        grid=grid,
        in_specs=[
            pl.BlockSpec((tb_eff, G * K), lambda i: (i, 0)),
            pl.BlockSpec((G * K, G * N), lambda i: (0, 0)),    # resident
            pl.BlockSpec((1, G * N), lambda i: (0, 0)),        # resident
        ],
        out_specs=pl.BlockSpec((tb_eff, G * N), lambda i: (i, 0)),
        compiler_params=pltpu.CompilerParams(
            dimension_semantics=("parallel",)),
        cost_estimate=pl.CostEstimate(
            flops=2 * R * (G * K) * (G * N),
            transcendentals=0,
            bytes_accessed=4 * (R * G * K + G * K * G * N + G * N
                                + R * G * N)),
    )(x_rows, A, b_row)

    out = out.reshape(M_pad, N)                                # free reshape
    if M_pad != M:
        out = out[:M]
    return out.reshape(*lead, N)


if __name__ == "__main__":
    key = jax.random.PRNGKey(0)
    kx, kw, kb = jax.random.split(key, 3)

    # PyTorch Linear(3, 4) layout: weight (N, K), bias (N,)
    weight = jax.random.normal(kw, (4, 3), dtype=jnp.float32) * 0.1
    bias = jax.random.normal(kb, (4,), dtype=jnp.float32) * 0.1

    def ref_fn(xi):
        return jnp.clip(jnp.einsum("...k,nk->...n", xi, weight) + bias,
                        MIN_VALUE, MAX_VALUE)

    # Tolerance allows for MXU reduced-precision (bf16-pass) f32 matmul.
    ATOL, RTOL = 2e-3, 2e-3

    # 1) main path: (2, 8, 16, 3) -> M=256 (multiple of 32: zero extra copies)
    x = jax.random.normal(kx, (2, 8, 16, 3), dtype=jnp.float32)
    out = jax.block_until_ready(linear_clamp(x, weight, bias))
    assert out.shape == (2, 8, 16, 4)
    assert jnp.allclose(out, ref_fn(x), atol=ATOL, rtol=RTOL)

    # 2) multi-step grid: M=4096 -> R=128, tb=16 -> grid=(8,)
    x2 = jax.random.normal(kx, (4, 32, 32, 3), dtype=jnp.float32)
    out2 = jax.block_until_ready(linear_clamp(x2, weight, bias, tb=16))
    assert out2.shape == (4, 32, 32, 4)
    assert jnp.allclose(out2, ref_fn(x2), atol=ATOL, rtol=RTOL)

    # 3) ragged last block: M=640 -> R=20, tb=8 -> grid=(3,), last block partial
    x3 = jax.random.normal(kx, (640, 3), dtype=jnp.float32)
    out3 = jax.block_until_ready(linear_clamp(x3, weight, bias, tb=8))
    assert out3.shape == (640, 4)
    assert jnp.allclose(out3, ref_fn(x3), atol=ATOL, rtol=RTOL)

    # 4) ragged M % 32 path: M=126 -> padded to 128 rows (fallback path)
    x4 = jax.random.normal(kx, (2, 7, 9, 3), dtype=jnp.float32)
    out4 = jax.block_until_ready(linear_clamp(x4, weight, bias))
    assert out4.shape == (2, 7, 9, 4)
    assert jnp.allclose(out4, ref_fn(x4), atol=ATOL, rtol=RTOL)

    print("KERNEL_OK")
</pallas_src>

<mosaic_0001>
module attributes {stable_mosaic.version = 11 : i64} {
  func.func @linear_clamp_kernel(%arg0: i32, %arg1: memref<8x96xf32, #tpu.memory_space<vmem>>, %arg2: memref<96x128xf32, #tpu.memory_space<vmem>>, %arg3: memref<1x128xf32, #tpu.memory_space<vmem>>, %arg4: memref<8x128xf32, #tpu.memory_space<vmem>>) attributes {dimension_semantics = [#tpu.dimension_semantics<parallel>], iteration_bounds = array<i64: 1>, scalar_prefetch = 0 : i64, scratch_operands = 0 : i64, tpu.core_type = #tpu.core_type<tc>, window_params = [{transform_indices = @transform_0, window_bounds = array<i64: 8, 96>}, {pipeline_mode = #tpu.pipeline_mode<synchronous>, transform_indices = @transform_1, window_bounds = array<i64: 96, 128>}, {pipeline_mode = #tpu.pipeline_mode<synchronous>, transform_indices = @transform_2, window_bounds = array<i64: 1, 128>}, {transform_indices = @transform_3, window_bounds = array<i64: 8, 128>}]} {
    %c0 = arith.constant 0 : index
    %c0_0 = arith.constant 0 : index
    %0 = vector.load %arg1[%c0, %c0_0] : memref<8x96xf32, #tpu.memory_space<vmem>>, vector<8x96xf32>
    %c0_1 = arith.constant 0 : index
    %c0_2 = arith.constant 0 : index
    %1 = vector.load %arg2[%c0_1, %c0_2] : memref<96x128xf32, #tpu.memory_space<vmem>>, vector<96x128xf32>
    %cst = arith.constant dense<0.000000e+00> : vector<8x128xf32>
    %2 = tpu.matmul %0, %1, %cst {dimension_numbers = #tpu.dot_dimension_numbers<[1], [0], [0], [1], [0, 0, 1, 1], [], []>} : vector<8x96xf32>, vector<96x128xf32>, vector<8x128xf32> -> vector<8x128xf32>
    %c0_3 = arith.constant 0 : index
    %c0_4 = arith.constant 0 : index
    %3 = vector.load %arg3[%c0_3, %c0_4] : memref<1x128xf32, #tpu.memory_space<vmem>>, vector<1x128xf32>
    %4 = vector.broadcast %3 : vector<1x128xf32> to vector<8x128xf32>
    %5 = arith.addf %2, %4 : vector<8x128xf32>
    %cst_5 = arith.constant -9.18180626E+37 : f32
    %6 = vector.broadcast %cst_5 : f32 to vector<8x128xf32>
    %7 = arith.maximumf %5, %6 : vector<8x128xf32>
    %cst_6 = arith.constant 9.15245761E+37 : f32
    %8 = vector.broadcast %cst_6 : f32 to vector<8x128xf32>
    %9 = arith.minimumf %7, %8 : vector<8x128xf32>
    %c0_7 = arith.constant 0 : index
    %c0_8 = arith.constant 0 : index
    %10 = vector.load %arg4[%c0_7, %c0_8] : memref<8x128xf32, #tpu.memory_space<vmem>>, vector<8x128xf32>
    tpu.vector_store %arg4[%c0_7, %c0_8], %9 {strides = array<i32>} : memref<8x128xf32, #tpu.memory_space<vmem>>, vector<8x128xf32>,
    return
  }
  func.func @transform_0(%arg0: i32) -> (i32, i32) {
    %c0_i32 = arith.constant 0 : i32
    %c0_i32_0 = arith.constant 0 : i32
    return %arg0, %c0_i32 : i32, i32
  }
  func.func @transform_1(%arg0: i32) -> (i32, i32) {
    %c0_i32 = arith.constant 0 : i32
    %c0_i32_0 = arith.constant 0 : i32
    %c0_i32_1 = arith.constant 0 : i32
    return %c0_i32, %c0_i32_0 : i32, i32
  }
  func.func @transform_2(%arg0: i32) -> (i32, i32) {
    %c0_i32 = arith.constant 0 : i32
    %c0_i32_0 = arith.constant 0 : i32
    %c0_i32_1 = arith.constant 0 : i32
    return %c0_i32, %c0_i32_0 : i32, i32
  }
  func.func @transform_3(%arg0: i32) -> (i32, i32) {
    %c0_i32 = arith.constant 0 : i32
    %c0_i32_0 = arith.constant 0 : i32
    return %arg0, %c0_i32 : i32, i32
  }
}

</mosaic_0001>

<llo_original>
// kernel: tpu_custom_call.1
$region0: #{tpu_custom_call.1}
  #allocation0 [shape = 'u32[]', space=smem, size = 0x4, offset = 0x4, fixed_abs, tag = 'smem constant byte address 0x4 - core index']
  #allocation1 [shape = 'u32[72,128]{1,0:T(1,128)}', space=vmem, size = 0x9000, scoped, tag = 'internal scratch']
  %s0 = inlined_call_operand.hbm [shape: f32[8,96], index: 0, kind: input, shape index: {}]
  %s1 = inlined_call_operand.hbm [shape: f32[96,128], index: 1, kind: input, shape index: {}]
  %s2 = inlined_call_operand.vmem [shape: f32[1,128], index: 2, kind: input, shape index: {}]
  %s3 = inlined_call_operand.hbm [shape: f32[8,128], index: 3, kind: output, shape index: {}]
  %s4 = sld [smem:[#allocation0]]
  $region30: #{tpu_custom_call.1} parent=0
    _
  %s6 = ssub.s32 1, %s4
  %s7 = scalar_select 0, %s6, %s4
  $region1: #{tpu_custom_call.1} parent=0
    #allocation2 [shape = 'u8[4096]{0}', space=vmem, size = 0x1000, scoped, tag = 'input window, operand 0, single buffered']
    #allocation3 [shape = 's32[1]{0}', space=sflag, size = 0x4, scoped, tag = 'scoped memory for tpu_custom_call.1']
    #allocation4 [shape = 's32[1]{0}', space=sflag, size = 0x4, scoped, tag = 'scoped memory for tpu_custom_call.1']
    #allocation5 [shape = 'u8[49152]{0}', space=vmem, size = 0xc000, scoped, tag = 'input window, operand 1, single buffered']
    #allocation6 [shape = 's32[1]{0}', space=sflag, size = 0x4, scoped, tag = 'scoped memory for tpu_custom_call.1']
    #allocation7 [shape = 'u8[4096]{0}', space=vmem, size = 0x1000, scoped, tag = 'output window, operand 0, single buffered']
    %8 = vsyncpa [#allocation3], 0
    %9 = vsyncpa [#allocation6], 0
    %10 = vsyncpa [#allocation4], 0
    // Predicated region
    $region2: #{tpu_custom_call.1} parent=1 // pred_check
      _
    $region3: #{tpu_custom_call.1} parent=1 // pred_check_branch
      %12 = sbr.rel (0) target = $region5
    $region4: #{tpu_custom_call.1} parent=1 // pred_region
      %14 = vsyncadd [#allocation3], 0
      %s16 = sshll.u32 %s0, 4
      %s17 = int_to_ptr.hbm [resolvable:$true] %s16
      %s18 = sshll.u32 [#allocation2], 4
      %s19 = int_to_ptr.vmem [resolvable:$true] %s18
      %21 = dma.hbm_to_vmem [thread:$0]  %s17, 128, %s19, [#allocation3]
    $region5: #{tpu_custom_call.1} parent=1 // pred_fallthru
      _
    // Predicated region
    $region6: #{tpu_custom_call.1} parent=1 // pred_check
      _
    $region7: #{tpu_custom_call.1} parent=1 // pred_check_branch
      %23 = sbr.rel (0) target = $region9
    $region8: #{tpu_custom_call.1} parent=1 // pred_region
      %25 = vsyncadd [#allocation6], 0
      %s26 = sshll.u32 %s1, 4
      %s27 = int_to_ptr.hbm [resolvable:$true] %s26
      %s28 = sshll.u32 [#allocation5], 4
      %s29 = int_to_ptr.vmem [resolvable:$true] %s28
      %34 = dma.hbm_to_vmem [thread:$0]  %s27, 1536, %s29, [#allocation6], 128, 128, 8
    $region9: #{tpu_custom_call.1} parent=1 // pred_fallthru
      _
    // Predicated region
    $region10: #{tpu_custom_call.1} parent=1 // pred_check
      _
    $region11: #{tpu_custom_call.1} parent=1 // pred_check_branch
      %36 = sbr.rel (0) target = $region13
    $region12: #{tpu_custom_call.1} parent=1 // pred_region
      _
    $region13: #{tpu_custom_call.1} parent=1 // pred_fallthru
      _
    // Predicated region
    $region14: #{tpu_custom_call.1} parent=1 // pred_check
      _
    $region15: #{tpu_custom_call.1} parent=1 // pred_check_branch
      %38 = sbr.rel (0) target = $region17
    $region16: #{tpu_custom_call.1} parent=1 // pred_region
      %40 = dma.done [#allocation3], 128
    $region17: #{tpu_custom_call.1} parent=1 // pred_fallthru
      _
    // Predicated region
    $region18: #{tpu_custom_call.1} parent=1 // pred_check
      _
    $region19: #{tpu_custom_call.1} parent=1 // pred_check_branch
      %42 = sbr.rel (0) target = $region21
    $region20: #{tpu_custom_call.1} parent=1 // pred_region
      %44 = dma.done [#allocation6], 1536
    $region21: #{tpu_custom_call.1} parent=1 // pred_fallthru
      _
    %v45 = vld [vmem:[#allocation2] sm:$0xff]
    %v46 = vld [vmem:[#allocation5] sm:$0xff]
    %v47 = vld [vmem:[#allocation5 + $0x8] sm:$0xff]
    %v48 = vld [vmem:[#allocation5 + $0x10] sm:$0xff]
    %v49 = vld [vmem:[#allocation5 + $0x18] sm:$0xff]
    %v50 = vld [vmem:[#allocation5 + $0x20] sm:$0xff]
    %v51 = vld [vmem:[#allocation5 + $0x28] sm:$0xff]
    %v52 = vld [vmem:[#allocation5 + $0x30] sm:$0xff]
    %v53 = vld [vmem:[#allocation5 + $0x38] sm:$0xff]
    %v54 = vld [vmem:[#allocation5 + $0x40] sm:$0xff]
    %v55 = vld [vmem:[#allocation5 + $0x48] sm:$0xff]
    %v56 = vld [vmem:[#allocation5 + $0x50] sm:$0xff]
    %v57 = vld [vmem:[#allocation5 + $0x58] sm:$0xff]
    %v58 = vld [vmem:[%s2] sm:$0x1]
    %v60 = vperm.slane %v58, 0
    %vm62 = vcmask 785408
    %v64 = vsel %vm62, %v45, 0
    %66 = vmatpush.msra.mxu0 0.0
    %67 = vmatpush.msra.mxu0 0.0
    %68 = vmatpush.msra.mxu0 0.0
    %69 = vmatpush.msra.mxu0 0.0
    %70 = vmatpush.msra.mxu0 %v57
    %71 = vmatpush.msra.mxu0 %v56
    %72 = vmatpush.msra.mxu0 %v55
    %73 = vmatpush.msra.mxu0 %v54
    %74 = vmatpush.msra.mxu0 %v53
    %75 = vmatpush.msra.mxu0 %v52
    %76 = vmatpush.msra.mxu0 %v51
    %77 = vmatpush.msra.mxu0 %v50
    %78 = vmatpush.msra.mxu0 %v49
    %79 = vmatpush.msra.mxu0 %v48
    %80 = vmatpush.msra.mxu0 %v47
    %81 = vmatpush.msra.mxu0 %v46
    %82 = vmatmul.f32.gmra.mxu0 %v64
    %v83 = vpop.f32.mrf.mxu0
    %v84 = vadd.f32 %v60, %v83
    %85 = vdwg.mxu0
    %v86 = vmax.f32 %v84, -9.181806e+37
    %v87 = vmin.f32 %v86, 9.152458e+37
    %88 = vst [vmem:[#allocation7] sm:$0xff] %v87
    // Predicated region
    $region22: #{tpu_custom_call.1} parent=1 // pred_check
      _
    $region23: #{tpu_custom_call.1} parent=1 // pred_check_branch
      %90 = sbr.rel (0) target = $region25
    $region24: #{tpu_custom_call.1} parent=1 // pred_region
      %92 = vsyncadd [#allocation4], 0
      %s94 = sshll.u32 [#allocation7], 4
      %s95 = int_to_ptr.vmem [resolvable:$true] %s94
      %s96 = sshll.u32 %s3, 4
      %s97 = int_to_ptr.hbm [resolvable:$true] %s96
      %99 = dma.vmem_to_hbm [thread:$0]  %s95, 128, %s97, [#allocation4]
    $region25: #{tpu_custom_call.1} parent=1 // pred_fallthru
      _
    // Predicated region
    $region26: #{tpu_custom_call.1} parent=1 // pred_check
      _
    $region27: #{tpu_custom_call.1} parent=1 // pred_check_branch
      %101 = sbr.rel (0) target = $region29
    $region28: #{tpu_custom_call.1} parent=1 // pred_region
      %103 = dma.done [#allocation4], 128
    $region29: #{tpu_custom_call.1} parent=1 // pred_fallthru
      _
    %104 = vsyncpa [#allocation3], 1
    %105 = vsyncpa [#allocation6], 1
    %106 = vsyncpa [#allocation4], 1

</llo_original>
